<compile_context>
chip_gen: v7x
topology: tpu7x:2x2x1
jax: 0.10.0
libtpu: 0.0.40
codegen_flags: <defaults>
</compile_context>

<pallas_src>
import functools

import jax
import jax.numpy as jnp
from jax import lax
from jax.experimental import pallas as pl
from jax.experimental.pallas import tpu as pltpu

_LANES = 128


def _binary_log_loss_kernel(x_ref, t_ref, o_ref, acc_ref, *,
                            block_rows, valid, needs_mask):
    i = pl.program_id(0)
    nblk = pl.num_programs(0)

    @pl.when(i == 0)
    def _():
        acc_ref[...] = jnp.zeros_like(acc_ref)

    x = x_ref[...]                                   # (block_rows, 128) f32
    t = t_ref[...]
    arg = t * (x * 0.9999 + 1e-05 - 0.5) + 0.5
    val = jnp.log(arg)                               # EUP transcendental

    if needs_mask:                                   # static: only if padded
        row = lax.broadcasted_iota(jnp.int32, val.shape, 0)
        col = lax.broadcasted_iota(jnp.int32, val.shape, 1)
        flat = (i * block_rows + row) * _LANES + col
        val = jnp.where(flat < valid, val, 0.0)

    # Per-lane partial sums: only a sublane reduction per grid step.
    acc_ref[...] += jnp.sum(val, axis=0, keepdims=True)

    @pl.when(i == nblk - 1)
    def _():
        # Single cross-lane reduction + negation, once per call.
        o_ref[...] = (-jnp.sum(acc_ref[...])).reshape(1, 1)


def binary_log_loss(inp, tgt, *, block_rows=1024):
    assert inp.shape == tgt.shape, "input/target must have identical shapes"
    n = inp.size
    x = inp.reshape(-1).astype(jnp.float32)
    t = tgt.reshape(-1).astype(jnp.float32)

    # Lane-dense layout: (rows, 128), rows sublane-aligned to 8 and an exact
    # multiple of the block size so the grid tiles cleanly.
    rows = -(-n // _LANES)
    rows = ((rows + 7) // 8) * 8
    block_rows = max(8, min(block_rows, rows))
    rows = ((rows + block_rows - 1) // block_rows) * block_rows
    padded = rows * _LANES
    pad = padded - n
    if pad:
        x = jnp.pad(x, (0, pad))
        t = jnp.pad(t, (0, pad))
    x2 = x.reshape(rows, _LANES)
    t2 = t.reshape(rows, _LANES)

    kernel = functools.partial(
        _binary_log_loss_kernel,
        block_rows=block_rows, valid=n, needs_mask=(pad > 0))

    out = pl.pallas_call(
        kernel,
        out_shape=jax.ShapeDtypeStruct((1, 1), jnp.float32),
        grid=(rows // block_rows,),
        in_specs=[
            pl.BlockSpec((block_rows, _LANES), lambda i: (i, 0)),
            pl.BlockSpec((block_rows, _LANES), lambda i: (i, 0)),
        ],
        out_specs=pl.BlockSpec((1, 1), lambda i: (0, 0)),
        scratch_shapes=[pltpu.VMEM((1, _LANES), jnp.float32)],
        compiler_params=pltpu.CompilerParams(
            dimension_semantics=("arbitrary",)),   # sequential reduction axis
    )(x2, t2)
    return out[0, 0]


def _reference(inp, tgt):
    return -jnp.sum(jnp.log(tgt * (inp * 0.9999 + 1e-05 - 0.5) + 0.5))


if __name__ == "__main__":
    key = jax.random.PRNGKey(0)
    k1, k2, k3, k4 = jax.random.split(key, 4)

    fwd = jax.jit(binary_log_loss)

    # Case 1: (2, 4, 16, 16) -> flattens to an exact (16, 128) tile (no pad).
    logits = jax.random.normal(k1, (2, 4, 16, 16), jnp.float32)
    inp = jax.nn.sigmoid(logits)                     # probabilities in (0, 1)
    tgt = jnp.where(jax.random.uniform(k2, (2, 4, 16, 16)) > 0.5, 1.0, -1.0)

    loss = fwd(inp, tgt)
    jax.block_until_ready(loss)
    ref = _reference(inp, tgt)
    assert jnp.allclose(loss, ref, rtol=1e-5, atol=1e-3), (loss, ref)

    # Case 2: ragged size (3, 5, 7) -> exercises the in-kernel padding mask.
    logits2 = jax.random.normal(k3, (3, 5, 7), jnp.float32)
    inp2 = jax.nn.sigmoid(logits2)
    tgt2 = jnp.where(jax.random.uniform(k4, (3, 5, 7)) > 0.5, 1.0, -1.0)

    loss2 = fwd(inp2, tgt2)
    jax.block_until_ready(loss2)
    ref2 = _reference(inp2, tgt2)
    assert jnp.allclose(loss2, ref2, rtol=1e-5, atol=1e-3), (loss2, ref2)

    print("KERNEL_OK")
</pallas_src>

<mosaic_0001>
module attributes {stable_mosaic.version = 11 : i64} {
  func.func @_binary_log_loss_kernel(%arg0: i32, %arg1: memref<16x128xf32, #tpu.memory_space<vmem>>, %arg2: memref<16x128xf32, #tpu.memory_space<vmem>>, %arg3: memref<1x1xf32, #tpu.memory_space<vmem>>, %arg4: memref<1x128xf32, #tpu.memory_space<vmem>>) attributes {dimension_semantics = [#tpu.dimension_semantics<arbitrary>], iteration_bounds = array<i64: 1>, scalar_prefetch = 0 : i64, scratch_operands = 1 : i64, tpu.core_type = #tpu.core_type<tc>, window_params = [{transform_indices = @transform_0, window_bounds = array<i64: 16, 128>}, {transform_indices = @transform_1, window_bounds = array<i64: 16, 128>}, {pipeline_mode = #tpu.pipeline_mode<synchronous>, transform_indices = @transform_2, window_bounds = array<i64: 1, 1>}]} {
    %c0_i32 = arith.constant 0 : i32
    %0 = arith.cmpi eq, %arg0, %c0_i32 : i32
    %1 = arith.extui %0 : i1 to i32
    %c0_i32_0 = arith.constant 0 : i32
    %2 = arith.cmpi ne, %1, %c0_i32_0 : i32
    scf.if %2 {
      %cst_14 = arith.constant 0.000000e+00 : f32
      %23 = vector.broadcast %cst_14 : f32 to vector<1x128xf32>
      %c0_15 = arith.constant 0 : index
      %c0_16 = arith.constant 0 : index
      %24 = vector.load %arg4[%c0_15, %c0_16] : memref<1x128xf32, #tpu.memory_space<vmem>>, vector<1x128xf32>
      tpu.vector_store %arg4[%c0_15, %c0_16], %23 {strides = array<i32>} : memref<1x128xf32, #tpu.memory_space<vmem>>, vector<1x128xf32>,
    } else {
    }
    %c0 = arith.constant 0 : index
    %c0_1 = arith.constant 0 : index
    %3 = vector.load %arg1[%c0, %c0_1] : memref<16x128xf32, #tpu.memory_space<vmem>>, vector<16x128xf32>
    %c0_2 = arith.constant 0 : index
    %c0_3 = arith.constant 0 : index
    %4 = vector.load %arg2[%c0_2, %c0_3] : memref<16x128xf32, #tpu.memory_space<vmem>>, vector<16x128xf32>
    %cst = arith.constant 0.999899983 : f32
    %5 = vector.broadcast %cst : f32 to vector<16x128xf32>
    %6 = arith.mulf %3, %5 : vector<16x128xf32>
    %cst_4 = arith.constant 9.99999974E-6 : f32
    %7 = vector.broadcast %cst_4 : f32 to vector<16x128xf32>
    %8 = arith.addf %6, %7 : vector<16x128xf32>
    %cst_5 = arith.constant 5.000000e-01 : f32
    %9 = vector.broadcast %cst_5 : f32 to vector<16x128xf32>
    %10 = arith.subf %8, %9 : vector<16x128xf32>
    %11 = arith.mulf %4, %10 : vector<16x128xf32>
    %cst_6 = arith.constant 5.000000e-01 : f32
    %12 = vector.broadcast %cst_6 : f32 to vector<16x128xf32>
    %13 = arith.addf %11, %12 : vector<16x128xf32>
    %14 = math.log %13 : vector<16x128xf32>
    %c0_7 = arith.constant 0 : index
    %c0_8 = arith.constant 0 : index
    %15 = vector.load %arg4[%c0_7, %c0_8] : memref<1x128xf32, #tpu.memory_space<vmem>>, vector<1x128xf32>
    %cst_9 = arith.constant dense<0.000000e+00> : vector<128xf32>
    %16 = vector.multi_reduction <add>, %14, %cst_9 [0] : vector<16x128xf32> to vector<128xf32>
    %17 = vector.shape_cast %16 : vector<128xf32> to vector<1x128xf32>
    %18 = arith.addf %15, %17 : vector<1x128xf32>
    %c0_10 = arith.constant 0 : index
    %c0_11 = arith.constant 0 : index
    %19 = vector.load %arg4[%c0_10, %c0_11] : memref<1x128xf32, #tpu.memory_space<vmem>>, vector<1x128xf32>
    tpu.vector_store %arg4[%c0_10, %c0_11], %18 {strides = array<i32>} : memref<1x128xf32, #tpu.memory_space<vmem>>, vector<1x128xf32>,
    %c0_i32_12 = arith.constant 0 : i32
    %20 = arith.cmpi eq, %arg0, %c0_i32_12 : i32
    %21 = arith.extui %20 : i1 to i32
    %c0_i32_13 = arith.constant 0 : i32
    %22 = arith.cmpi ne, %21, %c0_i32_13 : i32
    scf.if %22 {
      %c0_14 = arith.constant 0 : index
      %c0_15 = arith.constant 0 : index
      %23 = vector.load %arg4[%c0_14, %c0_15] : memref<1x128xf32, #tpu.memory_space<vmem>>, vector<1x128xf32>
      %24 = vector.shape_cast %23 : vector<1x128xf32> to vector<1x1x128xf32>
      %cst_16 = arith.constant dense<0.000000e+00> : vector<1xf32>
      %25 = vector.multi_reduction <add>, %24, %cst_16 [1, 2] : vector<1x1x128xf32> to vector<1xf32>
      %26 = vector.shape_cast %25 : vector<1xf32> to vector<1x1x1xf32>
      %27 = vector.extract %26[0, 0, 0] : f32 from vector<1x1x1xf32>
      %cst_17 = arith.constant 0.000000e+00 : f32
      %28 = arith.subf %cst_17, %27 : f32
      %29 = vector.broadcast %28 : f32 to vector<1x1xf32>
      %c0_18 = arith.constant 0 : index
      %c0_19 = arith.constant 0 : index
      %30 = vector.load %arg3[%c0_18, %c0_19] : memref<1x1xf32, #tpu.memory_space<vmem>>, vector<1x1xf32>
      tpu.vector_store %arg3[%c0_18, %c0_19], %29 {strides = array<i32>} : memref<1x1xf32, #tpu.memory_space<vmem>>, vector<1x1xf32>,
    } else {
    }
    return
  }
  func.func @transform_0(%arg0: i32) -> (i32, i32) {
    %c0_i32 = arith.constant 0 : i32
    %c0_i32_0 = arith.constant 0 : i32
    return %arg0, %c0_i32 : i32, i32
  }
  func.func @transform_1(%arg0: i32) -> (i32, i32) {
    %c0_i32 = arith.constant 0 : i32
    %c0_i32_0 = arith.constant 0 : i32
    return %arg0, %c0_i32 : i32, i32
  }
  func.func @transform_2(%arg0: i32) -> (i32, i32) {
    %c0_i32 = arith.constant 0 : i32
    %c0_i32_0 = arith.constant 0 : i32
    %c0_i32_1 = arith.constant 0 : i32
    return %c0_i32, %c0_i32_0 : i32, i32
  }
}

</mosaic_0001>

<llo_original>
// kernel: binary_log_loss.1
$region0: #{binary_log_loss.1}
  #allocation0 [shape = 'u32[]', space=smem, size = 0x4, offset = 0x4, fixed_abs, tag = 'smem constant byte address 0x4 - core index']
  #allocation1 [shape = 'u32[144,128]{1,0:T(1,128)}', space=vmem, size = 0x12000, scoped, tag = 'internal scratch']
  #allocation2 [shape = 'f32[1,128]{1,0:T(1,128)}', space=vmem, size = 0x200, scoped, tag = 'scratch operand']
  %s0 = inlined_call_operand.vmem [shape: f32[16,128], index: 0, kind: input, shape index: {}]
  %s1 = inlined_call_operand.vmem [shape: f32[16,128], index: 1, kind: input, shape index: {}]
  %s2 = inlined_call_operand.hbm [shape: f32[1,1], index: 2, kind: output, shape index: {}]
  %s3 = sld [smem:[#allocation0]]
  $region26: #{binary_log_loss.1} parent=0
    _
  %s5 = ssub.s32 1, %s3
  %s6 = scalar_select 0, %s5, %s3
  $region1: #{binary_log_loss.1} parent=0
    #allocation3 [shape = 'u8[512]{0}', space=vmem, size = 0x400, scoped, tag = 'output window, operand 0, single buffered']
    #allocation4 [shape = 's32[1]{0}', space=sflag, size = 0x4, scoped, tag = 'scoped memory for binary_log_loss.1']
    %7 = vsyncpa [#allocation4], 0
    // Predicated region
    $region2: #{binary_log_loss.1} parent=1 // pred_check
      _
    $region3: #{binary_log_loss.1} parent=1 // pred_check_branch
      %9 = sbr.rel (0) target = $region5
    $region4: #{binary_log_loss.1} parent=1 // pred_region
      _
    $region5: #{binary_log_loss.1} parent=1 // pred_fallthru
      _
    // Predicated region
    $region6: #{binary_log_loss.1} parent=1 // pred_check
      _
    $region7: #{binary_log_loss.1} parent=1 // pred_check_branch
      %11 = sbr.rel (0) target = $region9
    $region8: #{binary_log_loss.1} parent=1 // pred_region
      _
    $region9: #{binary_log_loss.1} parent=1 // pred_fallthru
      _
    %p12 = scmp.eq.s32.totalorder 0, 0
    // Predicated region
    $region10: #{binary_log_loss.1} parent=1 // pred_check
      %p13 = pneg %p12
    $region11: #{binary_log_loss.1} parent=1 // pred_check_branch
      %15 = sbr.rel (%p13) target = $region13
    $region12: #{binary_log_loss.1} parent=1 // pred_region
      %16 = vst [vmem:[#allocation2] sm:$0x1] 0.0
    $region13: #{binary_log_loss.1} parent=1 // pred_fallthru
      _
    %v17 = vld [vmem:[%s0] sm:$0xff]
    %v18 = vld [vmem:[%s0 + $0x8] sm:$0xff]
    %v19 = vld [vmem:[%s1] sm:$0xff]
    %v20 = vld [vmem:[%s1 + $0x8] sm:$0xff]
    %v21 = vmul.f32 %v17, 0.9999
    %v22 = vmul.f32 %v18, 0.9999
    %v23 = vadd.f32 %v21, 1e-05
    %v24 = vadd.f32 %v22, 1e-05
    %v25 = vsub.f32 %v23, 0.5
    %v26 = vsub.f32 %v24, 0.5
    %v27 = vmul.f32 %v19, %v25
    %v28 = vmul.f32 %v20, %v26
    %v29 = vadd.f32 %v27, 0.5
    %v30 = vadd.f32 %v28, 0.5
    %v31 = vlog2.pop %v29
    %v32 = vmul.f32 %v31, 0.6931472
    %v33 = vlog2.pop %v30
    %v34 = vmul.f32 %v33, 0.6931472
    %v35 = vld [vmem:[#allocation2] sm:$0x1]
    %v36 = vadd.f32 %v32, %v34
    %v37 = vrot.slane %v36, 4
    %v38 = vadd.f32 %v36, %v37
    %v39 = vrot.slane %v38, 2
    %v40 = vadd.f32 %v38, %v39
    %v41 = vrot.slane %v40, 1
    %v42 = vadd.f32 %v40, %v41
    %v43 = vadd.f32 %v35, %v42
    %44 = vst [vmem:[#allocation2] sm:$0x1] %v43
    // Predicated region
    $region14: #{binary_log_loss.1} parent=1 // pred_check
      %p45 = pneg %p12
    $region15: #{binary_log_loss.1} parent=1 // pred_check_branch
      %47 = sbr.rel (%p45) target = $region17
    $region16: #{binary_log_loss.1} parent=1 // pred_region
      %v48 = vld [vmem:[#allocation2] sm:$0x1]
      %vm49 = vcmask 1040384
      %v50 = vsel %vm49, %v48, 0.0
      %51 = vadd.xlane.f32.xlu0 %v50
      %v52 = vpop.xlane.xlu0 %51
      %v53 = vrot.slane %v52, 4
      %v54 = vadd.f32 %v52, %v53
      %v55 = vrot.slane %v54, 2
      %v56 = vadd.f32 %v54, %v55
      %v57 = vrot.slane %v56, 1
      %v58 = vadd.f32 %v56, %v57
      %s59 = vtos %v58
      %s60 = ssub.f32 0.0, %s59
      %v61 = vstv %s60
      %vm62 = vcmask 0
      %63 = vst.msk [vmem:[#allocation3] sm:$0x1] %vm62, %v61
    $region17: #{binary_log_loss.1} parent=1 // pred_fallthru
      _
    // Predicated region
    $region18: #{binary_log_loss.1} parent=1 // pred_check
      _
    $region19: #{binary_log_loss.1} parent=1 // pred_check_branch
      %65 = sbr.rel (0) target = $region21
    $region20: #{binary_log_loss.1} parent=1 // pred_region
      %s67 = ssub.s32 16, 16
      %68 = vsyncadd [#allocation4], %s67
      %s70 = sshll.u32 [#allocation3], 4
      %s71 = int_to_ptr.vmem [resolvable:$true] %s70
      %73 = dma.vmem_to_hbm [thread:$0]  %s71, 16, %s2, [#allocation4]
    $region21: #{binary_log_loss.1} parent=1 // pred_fallthru
      _
    // Predicated region
    $region22: #{binary_log_loss.1} parent=1 // pred_check
      _
    $region23: #{binary_log_loss.1} parent=1 // pred_check_branch
      %75 = sbr.rel (0) target = $region25
    $region24: #{binary_log_loss.1} parent=1 // pred_region
      %76 = dma.done [#allocation4], 16
    $region25: #{binary_log_loss.1} parent=1 // pred_fallthru
      _
    %77 = vsyncpa [#allocation4], 1

</llo_original>
